<compile_context>
chip_gen: v7x
topology: tpu7x:2x2x1
jax: 0.10.0
libtpu: 0.0.40
codegen_flags: <defaults>
</compile_context>

<pallas_src>
import functools

import numpy as np
import jax
import jax.numpy as jnp
from jax.experimental import pallas as pl
from jax.experimental.pallas import tpu as pltpu

LANE = 128           # TPU lane width (last dim)
MAX_BATCH_TILE = 256 # keep live f32 activation tile <= (256, 128) (~32 vregs)


def _round_up(n: int, m: int) -> int:
    return ((n + m - 1) // m) * m


def _sublane(dtype) -> int:
    # sublane packing: 8 rows for 32-bit, 16 rows for 16-bit dtypes
    return 16 if np.dtype(dtype).itemsize == 2 else 8


# ----------------------------------------------------------------------------
# Fused MLP kernel for one batch tile:
#   refs = (x_ref, w0_ref, b0_ref, w1_ref, b1_ref, ..., o_ref)
# x_ref is the (bt, fin_pad) activation tile in the compute dtype; weights are
# compute-dtype, biases f32.  Accumulation / bias-add / relu6 are f32.
# ----------------------------------------------------------------------------
def _fused_mlp_kernel(*refs):
    x_ref = refs[0]
    o_ref = refs[-1]
    layer_refs = refs[1:-1]
    num_layers = len(layer_refs) // 2

    out = x_ref[...]                                   # (bt, fin_pad), compute dtype
    for i in range(num_layers):                        # unrolled at trace time
        w = layer_refs[2 * i][...]                     # (fin_pad, fout_pad)
        b = layer_refs[2 * i + 1][...]                 # (1, fout_pad), f32
        acc = jnp.dot(out, w, preferred_element_type=jnp.float32) + b
        if i < num_layers - 1:
            acc = jnp.clip(acc, 0.0, 6.0)              # F.relu6, in f32
            out = acc.astype(x_ref.dtype)              # back to compute dtype for next MXU pass
        else:
            o_ref[...] = acc.astype(o_ref.dtype)


def fused_mlp_forward(x, padded_params, *, out_channels: int,
                      batch_tile: int = MAX_BATCH_TILE,
                      compute_dtype=jnp.bfloat16):
    """Run the whole MLP in a single pallas_call with a batch (parallel) grid.

    x:              (batch, in_channels) f32
    padded_params:  list of (w_t_pad (fin_pad, fout_pad) compute_dtype,
                             b_pad   (1, fout_pad)       f32)
    Returns (batch, out_channels) in x.dtype.
    """
    batch, fin = x.shape
    fin_pad = padded_params[0][0].shape[0]
    fout_pad = padded_params[-1][0].shape[1]

    sub = _sublane(compute_dtype)
    bt = min(batch_tile, _round_up(batch, sub))        # batch tile (multiple of sublane)
    batch_pad = _round_up(batch, bt)
    grid = (batch_pad // bt,)

    # Pad + cast the input once; fused by XLA with the surrounding jit graph.
    x_pad = (jnp.zeros((batch_pad, fin_pad), compute_dtype)
             .at[:batch, :fin].set(x.astype(compute_dtype)))

    args = [x_pad]
    in_specs = [pl.BlockSpec((bt, fin_pad), lambda i: (i, 0))]
    for (w_t, b) in padded_params:
        args.append(w_t)
        args.append(b)
        # Constant index_map -> weight/bias blocks stay resident across grid steps.
        in_specs.append(pl.BlockSpec(w_t.shape, lambda i: (0, 0)))
        in_specs.append(pl.BlockSpec(b.shape, lambda i: (0, 0)))
    out_spec = pl.BlockSpec((bt, fout_pad), lambda i: (i, 0))

    # Explicit VMEM budget (weights resident + double-buffered activation tiles),
    # capped below v7x's 64 MiB physical VMEM.
    param_bytes = sum(int(w.size) * w.dtype.itemsize + int(b.size) * b.dtype.itemsize
                      for (w, b) in padded_params)
    act_itemsize = np.dtype(compute_dtype).itemsize
    tile_bytes = bt * fin_pad * act_itemsize + bt * fout_pad * x.dtype.itemsize
    vmem_limit = int(min(max(param_bytes + 4 * tile_bytes + (2 << 20), 8 << 20), 48 << 20))

    out_pad = pl.pallas_call(
        _fused_mlp_kernel,
        out_shape=jax.ShapeDtypeStruct((batch_pad, fout_pad), x.dtype),
        grid=grid,
        in_specs=in_specs,
        out_specs=out_spec,
        compiler_params=pltpu.CompilerParams(
            dimension_semantics=("parallel",),          # megacore sharding on v7x
            vmem_limit_bytes=vmem_limit,
        ),
    )(*args)

    return out_pad[:batch, :out_channels]


# jit the whole wrapper so the pad/slice HLOs fuse with the pallas_call dispatch.
forward = jax.jit(fused_mlp_forward,
                  static_argnames=("out_channels", "batch_tile", "compute_dtype"))


# ----------------------------------------------------------------------------
# Parameter construction (matches PyTorch nn.Linear default init semantics:
# uniform(-1/sqrt(fan_in), 1/sqrt(fan_in)) for both weight and bias).
# ----------------------------------------------------------------------------
def init_params(key, in_channels, out_channels, h_sizes):
    """Returns a list of UNPADDED f32 (w_t (fin, fout), b (fout,)) pairs."""
    if h_sizes is not None:
        dims = [in_channels] + list(h_sizes) + [out_channels]
    else:
        dims = [in_channels, out_channels]
    params = []
    for fin, fout in zip(dims[:-1], dims[1:]):
        key, kw, kb = jax.random.split(key, 3)
        bound = 1.0 / jnp.sqrt(jnp.float32(fin))
        w_t = jax.random.uniform(kw, (fin, fout), jnp.float32, -bound, bound)
        b = jax.random.uniform(kb, (fout,), jnp.float32, -bound, bound)
        params.append((w_t, b))
    return params


def pad_params(params, compute_dtype=jnp.bfloat16):
    """One-time padding/cast of params to kernel-ready, lane/sublane-aligned arrays.

    Layer 0's fin is padded only to the sublane multiple (8 f32 / 16 bf16);
    later layers' fin is pinned to the previous layer's 128-aligned fout_pad.
    Weights are cast to compute_dtype; biases stay f32.
    """
    sub = _sublane(compute_dtype)
    padded = []
    prev_fout_pad = None
    for idx, (w_t, b) in enumerate(params):
        fin, fout = w_t.shape
        fin_pad = _round_up(fin, sub) if idx == 0 else prev_fout_pad
        fout_pad = _round_up(fout, LANE)
        w_pad = (jnp.zeros((fin_pad, fout_pad), compute_dtype)
                 .at[:fin, :fout].set(w_t.astype(compute_dtype)))
        b_pad = jnp.zeros((1, fout_pad), jnp.float32).at[0, :fout].set(b.astype(jnp.float32))
        padded.append((w_pad, b_pad))
        prev_fout_pad = fout_pad
    return padded


# ----------------------------------------------------------------------------
# Pure-JAX f32 reference (unpadded) for correctness checking.
# ----------------------------------------------------------------------------
def _reference_forward(x, params):
    out = x
    for (w_t, b) in params[:-1]:
        out = jnp.clip(out @ w_t + b, 0.0, 6.0)
    w_t, b = params[-1]
    return out @ w_t + b


if __name__ == "__main__":
    key = jax.random.PRNGKey(0)
    k_x, k_p = jax.random.split(key)

    in_channels = 16
    out_channels = 8
    h_sizes = [32, 32]
    batch = 8

    x = jax.random.normal(k_x, (batch, in_channels), jnp.float32)
    params = init_params(k_p, in_channels, out_channels, h_sizes)
    ref = _reference_forward(x, params)

    # --- f32 path: matches the PyTorch reference to ~1e-5 ---------------------
    params_f32 = pad_params(params, compute_dtype=jnp.float32)
    out_f32 = forward(x, params_f32, out_channels=out_channels,
                      compute_dtype=jnp.float32)
    out_f32 = jax.block_until_ready(out_f32)
    assert out_f32.shape == (batch, out_channels)
    assert jnp.allclose(out_f32, ref, atol=1e-5, rtol=1e-5)

    # --- bf16 weights/activations + f32 accumulation (MXU-native on v6e/v7x) --
    params_bf16 = pad_params(params, compute_dtype=jnp.bfloat16)
    out_bf16 = forward(x, params_bf16, out_channels=out_channels,
                       compute_dtype=jnp.bfloat16)
    out_bf16 = jax.block_until_ready(out_bf16)
    assert out_bf16.shape == (batch, out_channels)
    assert jnp.allclose(out_bf16, ref, atol=5e-2, rtol=5e-2)

    print("KERNEL_OK")
</pallas_src>

<mosaic_0001>
module attributes {stable_mosaic.version = 11 : i64} {
  func.func @_fused_mlp_kernel(%arg0: i32, %arg1: memref<8x16xf32, #tpu.memory_space<vmem>>, %arg2: memref<16x128xf32, #tpu.memory_space<vmem>>, %arg3: memref<1x128xf32, #tpu.memory_space<vmem>>, %arg4: memref<128x128xf32, #tpu.memory_space<vmem>>, %arg5: memref<1x128xf32, #tpu.memory_space<vmem>>, %arg6: memref<128x128xf32, #tpu.memory_space<vmem>>, %arg7: memref<1x128xf32, #tpu.memory_space<vmem>>, %arg8: memref<8x128xf32, #tpu.memory_space<vmem>>) attributes {dimension_semantics = [#tpu.dimension_semantics<parallel>], iteration_bounds = array<i64: 1>, scalar_prefetch = 0 : i64, scratch_operands = 0 : i64, tpu.core_type = #tpu.core_type<tc>, window_params = [{transform_indices = @transform_0, window_bounds = array<i64: 8, 16>}, {pipeline_mode = #tpu.pipeline_mode<synchronous>, transform_indices = @transform_1, window_bounds = array<i64: 16, 128>}, {pipeline_mode = #tpu.pipeline_mode<synchronous>, transform_indices = @transform_2, window_bounds = array<i64: 1, 128>}, {pipeline_mode = #tpu.pipeline_mode<synchronous>, transform_indices = @transform_3, window_bounds = array<i64: 128, 128>}, {pipeline_mode = #tpu.pipeline_mode<synchronous>, transform_indices = @transform_4, window_bounds = array<i64: 1, 128>}, {pipeline_mode = #tpu.pipeline_mode<synchronous>, transform_indices = @transform_5, window_bounds = array<i64: 128, 128>}, {pipeline_mode = #tpu.pipeline_mode<synchronous>, transform_indices = @transform_6, window_bounds = array<i64: 1, 128>}, {transform_indices = @transform_7, window_bounds = array<i64: 8, 128>}]} {
    %c0 = arith.constant 0 : index
    %c0_0 = arith.constant 0 : index
    %0 = vector.load %arg1[%c0, %c0_0] : memref<8x16xf32, #tpu.memory_space<vmem>>, vector<8x16xf32>
    %c0_1 = arith.constant 0 : index
    %c0_2 = arith.constant 0 : index
    %1 = vector.load %arg2[%c0_1, %c0_2] : memref<16x128xf32, #tpu.memory_space<vmem>>, vector<16x128xf32>
    %c0_3 = arith.constant 0 : index
    %c0_4 = arith.constant 0 : index
    %2 = vector.load %arg3[%c0_3, %c0_4] : memref<1x128xf32, #tpu.memory_space<vmem>>, vector<1x128xf32>
    %cst = arith.constant dense<0.000000e+00> : vector<8x128xf32>
    %3 = tpu.matmul %0, %1, %cst {dimension_numbers = #tpu.dot_dimension_numbers<[1], [0], [0], [1], [0, 0, 1, 1], [], []>} : vector<8x16xf32>, vector<16x128xf32>, vector<8x128xf32> -> vector<8x128xf32>
    %4 = vector.broadcast %2 : vector<1x128xf32> to vector<8x128xf32>
    %5 = arith.addf %3, %4 : vector<8x128xf32>
    %cst_5 = arith.constant 0.000000e+00 : f32
    %cst_6 = arith.constant 6.000000e+00 : f32
    %6 = vector.broadcast %cst_5 : f32 to vector<8x128xf32>
    %7 = arith.maximumf %6, %5 : vector<8x128xf32>
    %8 = vector.broadcast %cst_6 : f32 to vector<8x128xf32>
    %9 = arith.minimumf %8, %7 : vector<8x128xf32>
    %c0_7 = arith.constant 0 : index
    %c0_8 = arith.constant 0 : index
    %10 = vector.load %arg4[%c0_7, %c0_8] : memref<128x128xf32, #tpu.memory_space<vmem>>, vector<128x128xf32>
    %c0_9 = arith.constant 0 : index
    %c0_10 = arith.constant 0 : index
    %11 = vector.load %arg5[%c0_9, %c0_10] : memref<1x128xf32, #tpu.memory_space<vmem>>, vector<1x128xf32>
    %cst_11 = arith.constant dense<0.000000e+00> : vector<8x128xf32>
    %12 = tpu.matmul %9, %10, %cst_11 {dimension_numbers = #tpu.dot_dimension_numbers<[1], [0], [0], [1], [0, 0, 1, 1], [], []>} : vector<8x128xf32>, vector<128x128xf32>, vector<8x128xf32> -> vector<8x128xf32>
    %13 = vector.broadcast %11 : vector<1x128xf32> to vector<8x128xf32>
    %14 = arith.addf %12, %13 : vector<8x128xf32>
    %cst_12 = arith.constant 0.000000e+00 : f32
    %cst_13 = arith.constant 6.000000e+00 : f32
    %15 = vector.broadcast %cst_12 : f32 to vector<8x128xf32>
    %16 = arith.maximumf %15, %14 : vector<8x128xf32>
    %17 = vector.broadcast %cst_13 : f32 to vector<8x128xf32>
    %18 = arith.minimumf %17, %16 : vector<8x128xf32>
    %c0_14 = arith.constant 0 : index
    %c0_15 = arith.constant 0 : index
    %19 = vector.load %arg6[%c0_14, %c0_15] : memref<128x128xf32, #tpu.memory_space<vmem>>, vector<128x128xf32>
    %c0_16 = arith.constant 0 : index
    %c0_17 = arith.constant 0 : index
    %20 = vector.load %arg7[%c0_16, %c0_17] : memref<1x128xf32, #tpu.memory_space<vmem>>, vector<1x128xf32>
    %cst_18 = arith.constant dense<0.000000e+00> : vector<8x128xf32>
    %21 = tpu.matmul %18, %19, %cst_18 {dimension_numbers = #tpu.dot_dimension_numbers<[1], [0], [0], [1], [0, 0, 1, 1], [], []>} : vector<8x128xf32>, vector<128x128xf32>, vector<8x128xf32> -> vector<8x128xf32>
    %22 = vector.broadcast %20 : vector<1x128xf32> to vector<8x128xf32>
    %23 = arith.addf %21, %22 : vector<8x128xf32>
    %c0_19 = arith.constant 0 : index
    %c0_20 = arith.constant 0 : index
    %24 = vector.load %arg8[%c0_19, %c0_20] : memref<8x128xf32, #tpu.memory_space<vmem>>, vector<8x128xf32>
    tpu.vector_store %arg8[%c0_19, %c0_20], %23 {strides = array<i32>} : memref<8x128xf32, #tpu.memory_space<vmem>>, vector<8x128xf32>,
    return
  }
  func.func @transform_0(%arg0: i32) -> (i32, i32) {
    %c0_i32 = arith.constant 0 : i32
    %c0_i32_0 = arith.constant 0 : i32
    return %arg0, %c0_i32 : i32, i32
  }
  func.func @transform_1(%arg0: i32) -> (i32, i32) {
    %c0_i32 = arith.constant 0 : i32
    %c0_i32_0 = arith.constant 0 : i32
    %c0_i32_1 = arith.constant 0 : i32
    return %c0_i32, %c0_i32_0 : i32, i32
  }
  func.func @transform_2(%arg0: i32) -> (i32, i32) {
    %c0_i32 = arith.constant 0 : i32
    %c0_i32_0 = arith.constant 0 : i32
    %c0_i32_1 = arith.constant 0 : i32
    return %c0_i32, %c0_i32_0 : i32, i32
  }
  func.func @transform_3(%arg0: i32) -> (i32, i32) {
    %c0_i32 = arith.constant 0 : i32
    %c0_i32_0 = arith.constant 0 : i32
    %c0_i32_1 = arith.constant 0 : i32
    return %c0_i32, %c0_i32_0 : i32, i32
  }
  func.func @transform_4(%arg0: i32) -> (i32, i32) {
    %c0_i32 = arith.constant 0 : i32
    %c0_i32_0 = arith.constant 0 : i32
    %c0_i32_1 = arith.constant 0 : i32
    return %c0_i32, %c0_i32_0 : i32, i32
  }
  func.func @transform_5(%arg0: i32) -> (i32, i32) {
    %c0_i32 = arith.constant 0 : i32
    %c0_i32_0 = arith.constant 0 : i32
    %c0_i32_1 = arith.constant 0 : i32
    return %c0_i32, %c0_i32_0 : i32, i32
  }
  func.func @transform_6(%arg0: i32) -> (i32, i32) {
    %c0_i32 = arith.constant 0 : i32
    %c0_i32_0 = arith.constant 0 : i32
    %c0_i32_1 = arith.constant 0 : i32
    return %c0_i32, %c0_i32_0 : i32, i32
  }
  func.func @transform_7(%arg0: i32) -> (i32, i32) {
    %c0_i32 = arith.constant 0 : i32
    %c0_i32_0 = arith.constant 0 : i32
    return %arg0, %c0_i32 : i32, i32
  }
}

</mosaic_0001>

<llo_original>
// kernel: fused_mlp_forward.1
$region0: #{fused_mlp_forward.1}
  #allocation0 [shape = 'u32[]', space=smem, size = 0x4, offset = 0x4, fixed_abs, tag = 'smem constant byte address 0x4 - core index']
  #allocation1 [shape = 'u32[144,128]{1,0:T(1,128)}', space=vmem, size = 0x12000, scoped, tag = 'internal scratch']
  %s0 = inlined_call_operand.hbm [shape: f32[8,16], index: 0, kind: input, shape index: {}]
  %s1 = inlined_call_operand.hbm [shape: f32[16,128], index: 1, kind: input, shape index: {}]
  %s2 = inlined_call_operand.vmem [shape: f32[1,128], index: 2, kind: input, shape index: {}]
  %s3 = inlined_call_operand.hbm [shape: f32[128,128], index: 3, kind: input, shape index: {}]
  %s4 = inlined_call_operand.vmem [shape: f32[1,128], index: 4, kind: input, shape index: {}]
  %s5 = inlined_call_operand.hbm [shape: f32[128,128], index: 5, kind: input, shape index: {}]
  %s6 = inlined_call_operand.vmem [shape: f32[1,128], index: 6, kind: input, shape index: {}]
  %s7 = inlined_call_operand.hbm [shape: f32[8,128], index: 7, kind: output, shape index: {}]
  %s8 = sld [smem:[#allocation0]]
  $region54: #{fused_mlp_forward.1} parent=0
    _
  %s10 = ssub.s32 1, %s8
  %s11 = scalar_select 0, %s10, %s8
  $region1: #{fused_mlp_forward.1} parent=0
    #allocation2 [shape = 'u8[4096]{0}', space=vmem, size = 0x1000, scoped, tag = 'input window, operand 0, single buffered']
    #allocation3 [shape = 's32[1]{0}', space=sflag, size = 0x4, scoped, tag = 'scoped memory for fused_mlp_forward.1']
    #allocation4 [shape = 's32[1]{0}', space=sflag, size = 0x4, scoped, tag = 'scoped memory for fused_mlp_forward.1']
    #allocation5 [shape = 'u8[8192]{0}', space=vmem, size = 0x2000, scoped, tag = 'input window, operand 1, single buffered']
    #allocation6 [shape = 's32[1]{0}', space=sflag, size = 0x4, scoped, tag = 'scoped memory for fused_mlp_forward.1']
    #allocation7 [shape = 'u8[65536]{0}', space=vmem, size = 0x10000, scoped, tag = 'input window, operand 3, single buffered']
    #allocation8 [shape = 'u8[65536]{0}', space=vmem, size = 0x10000, scoped, tag = 'input window, operand 5, single buffered']
    #allocation9 [shape = 's32[1]{0}', space=sflag, size = 0x4, scoped, tag = 'scoped memory for fused_mlp_forward.1']
    #allocation10 [shape = 'u8[4096]{0}', space=vmem, size = 0x1000, scoped, tag = 'output window, operand 0, single buffered']
    %12 = vsyncpa [#allocation3], 0
    %13 = vsyncpa [#allocation6], 0
    %14 = vsyncpa [#allocation9], 0
    %15 = vsyncpa [#allocation4], 0
    // Predicated region
    $region2: #{fused_mlp_forward.1} parent=1 // pred_check
      _
    $region3: #{fused_mlp_forward.1} parent=1 // pred_check_branch
      %17 = sbr.rel (0) target = $region5
    $region4: #{fused_mlp_forward.1} parent=1 // pred_region
      %s19 = ssub.s32 128, 128
      %20 = vsyncadd [#allocation3], %s19
      %s22 = sshll.u32 [#allocation2], 4
      %s23 = int_to_ptr.vmem [resolvable:$true] %s22
      %25 = dma.hbm_to_vmem [thread:$0]  %s0, 128, %s23, [#allocation3]
    $region5: #{fused_mlp_forward.1} parent=1 // pred_fallthru
      _
    // Predicated region
    $region6: #{fused_mlp_forward.1} parent=1 // pred_check
      _
    $region7: #{fused_mlp_forward.1} parent=1 // pred_check_branch
      %27 = sbr.rel (0) target = $region9
    $region8: #{fused_mlp_forward.1} parent=1 // pred_region
      %s29 = ssub.s32 256, 256
      %30 = vsyncadd [#allocation6], %s29
      %s31 = sshll.u32 [#allocation5], 4
      %s32 = int_to_ptr.vmem [resolvable:$true] %s31
      %37 = dma.hbm_to_vmem [thread:$0]  %s1, 256, %s32, [#allocation6], 128, 128, 8
    $region9: #{fused_mlp_forward.1} parent=1 // pred_fallthru
      _
    // Predicated region
    $region10: #{fused_mlp_forward.1} parent=1 // pred_check
      _
    $region11: #{fused_mlp_forward.1} parent=1 // pred_check_branch
      %39 = sbr.rel (0) target = $region13
    $region12: #{fused_mlp_forward.1} parent=1 // pred_region
      _
    $region13: #{fused_mlp_forward.1} parent=1 // pred_fallthru
      _
    // Predicated region
    $region14: #{fused_mlp_forward.1} parent=1 // pred_check
      _
    $region15: #{fused_mlp_forward.1} parent=1 // pred_check_branch
      %41 = sbr.rel (0) target = $region17
    $region16: #{fused_mlp_forward.1} parent=1 // pred_region
      %s43 = ssub.s32 2048, 2048
      %44 = vsyncadd [#allocation6], %s43
      %s45 = sshll.u32 [#allocation7], 4
      %s46 = int_to_ptr.vmem [resolvable:$true] %s45
      %51 = dma.hbm_to_vmem [thread:$0]  %s3, 2048, %s46, [#allocation6], 128, 128, 8
    $region17: #{fused_mlp_forward.1} parent=1 // pred_fallthru
      _
    // Predicated region
    $region18: #{fused_mlp_forward.1} parent=1 // pred_check
      _
    $region19: #{fused_mlp_forward.1} parent=1 // pred_check_branch
      %53 = sbr.rel (0) target = $region21
    $region20: #{fused_mlp_forward.1} parent=1 // pred_region
      _
    $region21: #{fused_mlp_forward.1} parent=1 // pred_fallthru
      _
    // Predicated region
    $region22: #{fused_mlp_forward.1} parent=1 // pred_check
      _
    $region23: #{fused_mlp_forward.1} parent=1 // pred_check_branch
      %55 = sbr.rel (0) target = $region25
    $region24: #{fused_mlp_forward.1} parent=1 // pred_region
      %s57 = ssub.s32 2048, 2048
      %58 = vsyncadd [#allocation9], %s57
      %s59 = sshll.u32 [#allocation8], 4
      %s60 = int_to_ptr.vmem [resolvable:$true] %s59
      %65 = dma.hbm_to_vmem [thread:$0]  %s5, 2048, %s60, [#allocation9], 128, 128, 8
    $region25: #{fused_mlp_forward.1} parent=1 // pred_fallthru
      _
    // Predicated region
    $region26: #{fused_mlp_forward.1} parent=1 // pred_check
      _
    $region27: #{fused_mlp_forward.1} parent=1 // pred_check_branch
      %67 = sbr.rel (0) target = $region29
    $region28: #{fused_mlp_forward.1} parent=1 // pred_region
      _
    $region29: #{fused_mlp_forward.1} parent=1 // pred_fallthru
      _
    // Predicated region
    $region30: #{fused_mlp_forward.1} parent=1 // pred_check
      _
    $region31: #{fused_mlp_forward.1} parent=1 // pred_check_branch
      %69 = sbr.rel (0) target = $region33
    $region32: #{fused_mlp_forward.1} parent=1 // pred_region
      %70 = dma.done [#allocation3], 128
    $region33: #{fused_mlp_forward.1} parent=1 // pred_fallthru
      _
    // Predicated region
    $region34: #{fused_mlp_forward.1} parent=1 // pred_check
      _
    $region35: #{fused_mlp_forward.1} parent=1 // pred_check_branch
      %72 = sbr.rel (0) target = $region37
    $region36: #{fused_mlp_forward.1} parent=1 // pred_region
      %73 = dma.done [#allocation6], 256
    $region37: #{fused_mlp_forward.1} parent=1 // pred_fallthru
      _
    // Predicated region
    $region38: #{fused_mlp_forward.1} parent=1 // pred_check
      _
    $region39: #{fused_mlp_forward.1} parent=1 // pred_check_branch
      %75 = sbr.rel (0) target = $region41
    $region40: #{fused_mlp_forward.1} parent=1 // pred_region
      %76 = dma.done [#allocation6], 2048
    $region41: #{fused_mlp_forward.1} parent=1 // pred_fallthru
      _
    // Predicated region
    $region42: #{fused_mlp_forward.1} parent=1 // pred_check
      _
    $region43: #{fused_mlp_forward.1} parent=1 // pred_check_branch
      %78 = sbr.rel (0) target = $region45
    $region44: #{fused_mlp_forward.1} parent=1 // pred_region
      %79 = dma.done [#allocation9], 2048
    $region45: #{fused_mlp_forward.1} parent=1 // pred_fallthru
      _
    %v80 = vld [vmem:[#allocation2] sm:$0xff]
    %v81 = vld [vmem:[#allocation5] sm:$0xff]
    %v82 = vld [vmem:[#allocation5 + $0x8] sm:$0xff]
    %v83 = vld [vmem:[%s2] sm:$0x1]
    %v85 = vlaneseq
    %v86 = vshrl.u32 %v85, 7
    %v87 = vsub.s32 0, %v86
    %v88 = vrot.slane %v83, %v87
    %vm90 = vcmask 130048
    %v92 = vsel %vm90, %v80, 0
    %94 = vmatprep.subr.mxu0 0.0
    %95 = vmatpush1.msra.mxu0 %v81
    %96 = vmatprep.subr.mxu0 0.0
    %97 = vmatpush1.msra.mxu0 %v82
    %98 = vmatprep.subr.mxu0 0.0
    %99 = vmatpush1.msra.mxu0 0.0
    %100 = vmatprep.subr.mxu0 0.0
    %101 = vmatpush1.msra.mxu0 0.0
    %102 = vmatprep.subr.mxu0 0.0
    %103 = vmatpush1.msra.mxu0 0.0
    %104 = vmatprep.subr.mxu0 0.0
    %105 = vmatpush1.msra.mxu0 0.0
    %106 = vmatprep.subr.mxu0 0.0
    %107 = vmatpush1.msra.mxu0 0.0
    %108 = vmatprep.subr.mxu0 0.0
    %109 = vmatpush1.msra.mxu0 0.0
    %110 = vmatprep.subr.mxu0 0.0
    %111 = vmatpush1.msra.mxu0 0.0
    %112 = vmatprep.subr.mxu0 0.0
    %113 = vmatpush1.msra.mxu0 0.0
    %114 = vmatprep.subr.mxu0 0.0
    %115 = vmatpush1.msra.mxu0 0.0
    %116 = vmatprep.subr.mxu0 0.0
    %117 = vmatpush1.msra.mxu0 0.0
    %118 = vmatprep.subr.mxu0 0.0
    %119 = vmatpush1.msra.mxu0 0.0
    %120 = vmatprep.subr.mxu0 0.0
    %121 = vmatpush1.msra.mxu0 0.0
    %122 = vmatprep.subr.mxu0 0.0
    %123 = vmatpush1.msra.mxu0 0.0
    %124 = vmatprep.subr.mxu0 0.0
    %125 = vmatpush1.msra.mxu0 0.0
    %126 = vmatprep.subr.mxu0 0.0
    %127 = vmatpush1.msra.mxu0 0.0
    %128 = vmatprep.subr.mxu0 0.0
    %129 = vmatpush1.msra.mxu0 0.0
    %130 = vmatprep.subr.mxu0 0.0
    %131 = vmatpush1.msra.mxu0 0.0
    %132 = vmatprep.subr.mxu0 0.0
    %133 = vmatpush1.msra.mxu0 0.0
    %134 = vmatprep.subr.mxu0 0.0
    %135 = vmatpush1.msra.mxu0 0.0
    %136 = vmatprep.subr.mxu0 0.0
    %137 = vmatpush1.msra.mxu0 0.0
    %138 = vmatprep.subr.mxu0 0.0
    %139 = vmatpush1.msra.mxu0 0.0
    %140 = vmatprep.subr.mxu0 0.0
    %141 = vmatpush1.msra.mxu0 0.0
    %142 = vmatprep.subr.mxu0 0.0
    %143 = vmatpush1.msra.mxu0 0.0
    %144 = vmatprep.subr.mxu0 0.0
    %145 = vmatpush1.msra.mxu0 0.0
    %146 = vmatprep.subr.mxu0 0.0
    %147 = vmatpush1.msra.mxu0 0.0
    %148 = vmatprep.subr.mxu0 0.0
    %149 = vmatpush1.msra.mxu0 0.0
    %150 = vmatprep.subr.mxu0 0.0
    %151 = vmatpush1.msra.mxu0 0.0
    %152 = vmatprep.subr.mxu0 0.0
    %153 = vmatpush1.msra.mxu0 0.0
    %154 = vmatprep.subr.mxu0 0.0
    %155 = vmatpush1.msra.mxu0 0.0
    %156 = vmatprep.subr.mxu0 0.0
    %157 = vmatpush1.msra.mxu0 0.0
    %158 = vmatprep.mubr.f32.mxu0 0.0
    %159 = vmatmul.mubr.f32.gmra.mrb[0].mxu0 %v92
    %v160 = vpop.f32.mrb[0].mxu0
    %v161 = vadd.f32 %v88, %v160
    %v162 = vpop.f32.mrb[0].mxu0
    %163 = vdwg.mxu0
    %v164 = vmax.f32 %v161, 0.0
    %v165 = vmin.f32 %v164, 6.0
    %v166 = vld [vmem:[#allocation7] sm:$0xff]
    %v167 = vld [vmem:[#allocation7 + $0x8] sm:$0xff]
    %v168 = vld [vmem:[#allocation7 + $0x10] sm:$0xff]
    %v169 = vld [vmem:[#allocation7 + $0x18] sm:$0xff]
    %v170 = vld [vmem:[#allocation7 + $0x20] sm:$0xff]
    %v171 = vld [vmem:[#allocation7 + $0x28] sm:$0xff]
    %v172 = vld [vmem:[#allocation7 + $0x30] sm:$0xff]
    %v173 = vld [vmem:[#allocation7 + $0x38] sm:$0xff]
    %v174 = vld [vmem:[#allocation7 + $0x40] sm:$0xff]
    %v175 = vld [vmem:[#allocation7 + $0x48] sm:$0xff]
    %v176 = vld [vmem:[#allocation7 + $0x50] sm:$0xff]
    %v177 = vld [vmem:[#allocation7 + $0x58] sm:$0xff]
    %v178 = vld [vmem:[#allocation7 + $0x60] sm:$0xff]
    %v179 = vld [vmem:[#allocation7 + $0x68] sm:$0xff]
    %v180 = vld [vmem:[#allocation7 + $0x70] sm:$0xff]
    %v181 = vld [vmem:[#allocation7 + $0x78] sm:$0xff]
    %v182 = vld [vmem:[%s4] sm:$0x1]
    %v184 = vlaneseq
    %v185 = vshrl.u32 %v184, 7
    %v186 = vsub.s32 0, %v185
    %v187 = vrot.slane %v182, %v186
    %189 = vmatprep.subr.mxu0 0.0
    %190 = vmatpush1.msra.mxu0 %v166
    %191 = vmatprep.subr.mxu0 0.0
    %192 = vmatpush1.msra.mxu0 %v167
    %193 = vmatprep.subr.mxu0 0.0
    %194 = vmatpush1.msra.mxu0 %v168
    %195 = vmatprep.subr.mxu0 0.0
    %196 = vmatpush1.msra.mxu0 %v169
    %197 = vmatprep.subr.mxu0 0.0
    %198 = vmatpush1.msra.mxu0 %v170
    %199 = vmatprep.subr.mxu0 0.0
    %200 = vmatpush1.msra.mxu0 %v171
    %201 = vmatprep.subr.mxu0 0.0
    %202 = vmatpush1.msra.mxu0 %v172
    %203 = vmatprep.subr.mxu0 0.0
    %204 = vmatpush1.msra.mxu0 %v173
    %205 = vmatprep.subr.mxu0 0.0
    %206 = vmatpush1.msra.mxu0 %v174
    %207 = vmatprep.subr.mxu0 0.0
    %208 = vmatpush1.msra.mxu0 %v175
    %209 = vmatprep.subr.mxu0 0.0
    %210 = vmatpush1.msra.mxu0 %v176
    %211 = vmatprep.subr.mxu0 0.0
    %212 = vmatpush1.msra.mxu0 %v177
    %213 = vmatprep.subr.mxu0 0.0
    %214 = vmatpush1.msra.mxu0 %v178
    %215 = vmatprep.subr.mxu0 0.0
    %216 = vmatpush1.msra.mxu0 %v179
    %217 = vmatprep.subr.mxu0 0.0
    %218 = vmatpush1.msra.mxu0 %v180
    %219 = vmatprep.subr.mxu0 0.0
    %220 = vmatpush1.msra.mxu0 %v181
    %221 = vmatprep.subr.mxu0 0.0
    %222 = vmatpush1.msra.mxu0 0.0
    %223 = vmatprep.subr.mxu0 0.0
    %224 = vmatpush1.msra.mxu0 0.0
    %225 = vmatprep.subr.mxu0 0.0
    %226 = vmatpush1.msra.mxu0 0.0
    %227 = vmatprep.subr.mxu0 0.0
    %228 = vmatpush1.msra.mxu0 0.0
    %229 = vmatprep.subr.mxu0 0.0
    %230 = vmatpush1.msra.mxu0 0.0
    %231 = vmatprep.subr.mxu0 0.0
    %232 = vmatpush1.msra.mxu0 0.0
    %233 = vmatprep.subr.mxu0 0.0
    %234 = vmatpush1.msra.mxu0 0.0
    %235 = vmatprep.subr.mxu0 0.0
    %236 = vmatpush1.msra.mxu0 0.0
    %237 = vmatprep.subr.mxu0 0.0
    %238 = vmatpush1.msra.mxu0 0.0
    %239 = vmatprep.subr.mxu0 0.0
    %240 = vmatpush1.msra.mxu0 0.0
    %241 = vmatprep.subr.mxu0 0.0
    %242 = vmatpush1.msra.mxu0 0.0
    %243 = vmatprep.subr.mxu0 0.0
    %244 = vmatpush1.msra.mxu0 0.0
    %245 = vmatprep.subr.mxu0 0.0
    %246 = vmatpush1.msra.mxu0 0.0
    %247 = vmatprep.subr.mxu0 0.0
    %248 = vmatpush1.msra.mxu0 0.0
    %249 = vmatprep.subr.mxu0 0.0
    %250 = vmatpush1.msra.mxu0 0.0
    %251 = vmatprep.subr.mxu0 0.0
    %252 = vmatpush1.msra.mxu0 0.0
    %253 = vmatprep.mubr.f32.mxu0 0.0
    %254 = vmatmul.mubr.f32.gmra.mrb[0].mxu0 %v165
    %v255 = vpop.f32.mrb[0].mxu0
    %v256 = vadd.f32 %v187, %v255
    %v257 = vpop.f32.mrb[0].mxu0
    %258 = vdwg.mxu0
    %v259 = vmax.f32 %v256, 0.0
    %v260 = vmin.f32 %v259, 6.0
    %v261 = vld [vmem:[#allocation8] sm:$0xff]
    %v262 = vld [vmem:[#allocation8 + $0x8] sm:$0xff]
    %v263 = vld [vmem:[#allocation8 + $0x10] sm:$0xff]
    %v264 = vld [vmem:[#allocation8 + $0x18] sm:$0xff]
    %v265 = vld [vmem:[#allocation8 + $0x20] sm:$0xff]
    %v266 = vld [vmem:[#allocation8 + $0x28] sm:$0xff]
    %v267 = vld [vmem:[#allocation8 + $0x30] sm:$0xff]
    %v268 = vld [vmem:[#allocation8 + $0x38] sm:$0xff]
    %v269 = vld [vmem:[#allocation8 + $0x40] sm:$0xff]
    %v270 = vld [vmem:[#allocation8 + $0x48] sm:$0xff]
    %v271 = vld [vmem:[#allocation8 + $0x50] sm:$0xff]
    %v272 = vld [vmem:[#allocation8 + $0x58] sm:$0xff]
    %v273 = vld [vmem:[#allocation8 + $0x60] sm:$0xff]
    %v274 = vld [vmem:[#allocation8 + $0x68] sm:$0xff]
    %v275 = vld [vmem:[#allocation8 + $0x70] sm:$0xff]
    %v276 = vld [vmem:[#allocation8 + $0x78] sm:$0xff]
    %v277 = vld [vmem:[%s6] sm:$0x1]
    %v279 = vlaneseq
    %v280 = vshrl.u32 %v279, 7
    %v281 = vsub.s32 0, %v280
    %v282 = vrot.slane %v277, %v281
    %284 = vmatprep.subr.mxu0 0.0
    %285 = vmatpush1.msra.mxu0 %v261
    %286 = vmatprep.subr.mxu0 0.0
    %287 = vmatpush1.msra.mxu0 %v262
    %288 = vmatprep.subr.mxu0 0.0
    %289 = vmatpush1.msra.mxu0 %v263
    %290 = vmatprep.subr.mxu0 0.0
    %291 = vmatpush1.msra.mxu0 %v264
    %292 = vmatprep.subr.mxu0 0.0
    %293 = vmatpush1.msra.mxu0 %v265
    %294 = vmatprep.subr.mxu0 0.0
    %295 = vmatpush1.msra.mxu0 %v266
    %296 = vmatprep.subr.mxu0 0.0
    %297 = vmatpush1.msra.mxu0 %v267
    %298 = vmatprep.subr.mxu0 0.0
    %299 = vmatpush1.msra.mxu0 %v268
    %300 = vmatprep.subr.mxu0 0.0
    %301 = vmatpush1.msra.mxu0 %v269
    %302 = vmatprep.subr.mxu0 0.0
    %303 = vmatpush1.msra.mxu0 %v270
    %304 = vmatprep.subr.mxu0 0.0
    %305 = vmatpush1.msra.mxu0 %v271
    %306 = vmatprep.subr.mxu0 0.0
    %307 = vmatpush1.msra.mxu0 %v272
    %308 = vmatprep.subr.mxu0 0.0
    %309 = vmatpush1.msra.mxu0 %v273
    %310 = vmatprep.subr.mxu0 0.0
    %311 = vmatpush1.msra.mxu0 %v274
    %312 = vmatprep.subr.mxu0 0.0
    %313 = vmatpush1.msra.mxu0 %v275
    %314 = vmatprep.subr.mxu0 0.0
    %315 = vmatpush1.msra.mxu0 %v276
    %316 = vmatprep.subr.mxu0 0.0
    %317 = vmatpush1.msra.mxu0 0.0
    %318 = vmatprep.subr.mxu0 0.0
    %319 = vmatpush1.msra.mxu0 0.0
    %320 = vmatprep.subr.mxu0 0.0
    %321 = vmatpush1.msra.mxu0 0.0
    %322 = vmatprep.subr.mxu0 0.0
    %323 = vmatpush1.msra.mxu0 0.0
    %324 = vmatprep.subr.mxu0 0.0
    %325 = vmatpush1.msra.mxu0 0.0
    %326 = vmatprep.subr.mxu0 0.0
    %327 = vmatpush1.msra.mxu0 0.0
    %328 = vmatprep.subr.mxu0 0.0
    %329 = vmatpush1.msra.mxu0 0.0
    %330 = vmatprep.subr.mxu0 0.0
    %331 = vmatpush1.msra.mxu0 0.0
    %332 = vmatprep.subr.mxu0 0.0
    %333 = vmatpush1.msra.mxu0 0.0
    %334 = vmatprep.subr.mxu0 0.0
    %335 = vmatpush1.msra.mxu0 0.0
    %336 = vmatprep.subr.mxu0 0.0
    %337 = vmatpush1.msra.mxu0 0.0
    %338 = vmatprep.subr.mxu0 0.0
    %339 = vmatpush1.msra.mxu0 0.0
    %340 = vmatprep.subr.mxu0 0.0
    %341 = vmatpush1.msra.mxu0 0.0
    %342 = vmatprep.subr.mxu0 0.0
    %343 = vmatpush1.msra.mxu0 0.0
    %344 = vmatprep.subr.mxu0 0.0
    %345 = vmatpush1.msra.mxu0 0.0
    %346 = vmatprep.subr.mxu0 0.0
    %347 = vmatpush1.msra.mxu0 0.0
    %348 = vmatprep.mubr.f32.mxu0 0.0
    %349 = vmatmul.mubr.f32.gmra.mrb[0].mxu0 %v260
    %v350 = vpop.f32.mrb[0].mxu0
    %v351 = vadd.f32 %v282, %v350
    %v352 = vpop.f32.mrb[0].mxu0
    %353 = vdwg.mxu0
    %354 = vst [vmem:[#allocation10] sm:$0xff] %v351
    // Predicated region
    $region46: #{fused_mlp_forward.1} parent=1 // pred_check
      _
    $region47: #{fused_mlp_forward.1} parent=1 // pred_check_branch
      %356 = sbr.rel (0) target = $region49
    $region48: #{fused_mlp_forward.1} parent=1 // pred_region
      %s358 = ssub.s32 128, 128
      %359 = vsyncadd [#allocation4], %s358
      %s361 = sshll.u32 [#allocation10], 4
      %s362 = int_to_ptr.vmem [resolvable:$true] %s361
      %364 = dma.vmem_to_hbm [thread:$0]  %s362, 128, %s7, [#allocation4]
    $region49: #{fused_mlp_forward.1} parent=1 // pred_fallthru
      _
    // Predicated region
    $region50: #{fused_mlp_forward.1} parent=1 // pred_check
      _
    $region51: #{fused_mlp_forward.1} parent=1 // pred_check_branch
      %366 = sbr.rel (0) target = $region53
    $region52: #{fused_mlp_forward.1} parent=1 // pred_region
      %367 = dma.done [#allocation4], 128
    $region53: #{fused_mlp_forward.1} parent=1 // pred_fallthru
      _
    %368 = vsyncpa [#allocation3], 1
    %369 = vsyncpa [#allocation6], 1
    %370 = vsyncpa [#allocation9], 1
    %371 = vsyncpa [#allocation4], 1

</llo_original>
